<compile_context>
chip_gen: v7x
topology: tpu7x:2x2x1
jax: 0.10.0
libtpu: 0.0.40
codegen_flags: <defaults>
</compile_context>

<pallas_src>
import functools

import jax
import jax.numpy as jnp
from jax.experimental import pallas as pl
from jax.experimental.pallas import tpu as pltpu


def _round_up(x, m):
    return ((x + m - 1) // m) * m


def _pad_axis(x, axis, new_size):
    if x.shape[axis] == new_size:
        return x
    pads = [(0, 0)] * x.ndim
    pads[axis] = (0, new_size - x.shape[axis])
    return jnp.pad(x, pads)


def _sdpa_kernel(*refs, inv_temperature, has_mask, lk_valid, lk_padded):
    if has_mask:
        q_ref, k_ref, v_ref, mask_ref, out_ref, attn_ref = refs
    else:
        q_ref, k_ref, v_ref, out_ref, attn_ref = refs
        mask_ref = None

    # Fold 1/temperature into q: th*tq*D multiplies instead of scaling the
    # th*tq*Lk f32 score tile.
    q = q_ref[...]                                           # (th, tq, D)
    q = q * jnp.asarray(inv_temperature, dtype=q.dtype)
    k = k_ref[...]                                           # (th, Lk_pad, D)
    v = v_ref[...]                                           # (th, Lk_pad, Dv_pad)

    # scores = (q/T) @ k^T; contraction on the last dims so k is consumed in
    # its stored layout (no XLU transpose), f32 accumulation on the MXU.
    scores = jnp.einsum("hqd,hkd->hqk", q, k,
                        preferred_element_type=jnp.float32)  # (th, tq, Lk_pad) f32

    if has_mask:
        # int8 broadcast-shaped mask; zero-padded key columns are masked too.
        scores = jnp.where(mask_ref[...] == 0, jnp.float32(-1e9), scores)
    elif lk_padded > lk_valid:
        # No user mask: mask only the lane-padding columns, generated in-kernel
        # (no HBM traffic for a mask tensor).
        col = jax.lax.broadcasted_iota(jnp.int32, scores.shape, dimension=2)
        scores = jnp.where(col < lk_valid, scores, jnp.float32(-1e9))

    # numerically stable softmax over keys (f32)
    smax = jnp.max(scores, axis=-1, keepdims=True)
    p = jnp.exp(scores - smax)
    denom = jnp.sum(p, axis=-1, keepdims=True)
    # exact reciprocal: attn is a returned output -> keep PyTorch softmax parity
    attn = p * pl.reciprocal(denom, approx=False)

    # dropout(p=0.1): identity (eval-mode forward)
    # TODO(synk): training-mode dropout would need pltpu.prng_seed/prng_random_bits.

    out = jnp.einsum("hqk,hkd->hqd", attn.astype(v.dtype), v,
                     preferred_element_type=jnp.float32)     # (th, tq, Dv_pad)

    out_ref[...] = out.astype(out_ref.dtype)
    attn_ref[...] = attn.astype(attn_ref.dtype)


def _pick_q_tile(Lq, Lk_pad, itemsize, budget):
    """Largest tq that divides Lq, respects sublane packing for the dtype, and
    keeps one head's live f32 temporaries (~3 x tq x Lk_pad) within ~1/4 of the
    per-step VMEM budget."""
    mult = max(8, 32 // max(itemsize, 1))
    cap = max(mult, min(1024, budget // (48 * max(Lk_pad, 1))))
    if Lq <= cap:
        return Lq                       # full extent is always a legal block dim
    tq = (cap // mult) * mult
    while tq >= mult:
        if Lq % tq == 0:
            return tq
        tq -= mult
    return Lq


def _pick_head_tile(BH, per_head_bytes, budget):
    """Largest divisor of BH whose per-step footprint fits the budget, keeping
    >= 2 (preferably an even number of) steps on the leading parallel axis so
    both v7x TensorCores get balanced work."""
    divisors = [d for d in range(1, BH + 1) if BH % d == 0]
    feasible = [d for d in divisors if d * per_head_bytes <= budget] or [1]
    multi = [d for d in feasible if BH // d >= 2] or feasible
    even = [d for d in multi if (BH // d) % 2 == 0]
    return max(even or multi)


def scaled_dot_product_attention(q, k, v, temperature, mask=None):
    """Pallas TPU scaled dot-product attention.  Returns (output, attn)."""
    B, H, Lq, D = q.shape
    Lk = k.shape[2]
    Dv = v.shape[3]
    BH = B * H
    isz = jnp.dtype(q.dtype).itemsize
    has_mask = mask is not None

    # Lane-dense outputs: pad attn's last dim (Lk) and out's last dim (Dv) to
    # multiples of 128.  Padded keys are masked in-kernel; padded V cols are 0.
    Lk_pad = _round_up(Lk, 128)
    Dv_pad = _round_up(Dv, 128)

    qr = q.reshape(BH, Lq, D)
    kr = _pad_axis(k.reshape(BH, Lk, D), 1, Lk_pad)
    vr = _pad_axis(_pad_axis(v.reshape(BH, Lk, Dv), 2, Dv_pad), 1, Lk_pad)

    # Generation-aware VMEM budget (v7x: 64 MiB/TC, v5e/v6e: 128 MiB).
    try:
        vmem_cap = int(pltpu.get_tpu_info().vmem_capacity_bytes)
    except Exception:
        vmem_cap = 64 << 20             # conservative (v7x-sized) fallback
    budget = min(vmem_cap // 3, 32 << 20)

    tq = _pick_q_tile(Lq, Lk_pad, isz, budget)

    # Mask: keep broadcast form, 1 byte per element (int8), never f32.
    bh_bcast = True
    q_bcast = True
    mr = None
    if has_mask:
        m = jnp.asarray(mask)
        m = m.reshape((1,) * (4 - m.ndim) + m.shape)         # rank-4, torch bcast
        mB, mH, mLq, mLk = m.shape
        bh_bcast = (mB == 1 and mH == 1)
        q_bcast = (mLq == 1)
        m = (m != 0).astype(jnp.int8)
        if not bh_bcast:
            m = jnp.broadcast_to(m, (B, H) + m.shape[2:])
        if mLk == 1:
            m = jnp.broadcast_to(m, m.shape[:3] + (Lk,))
        m = m.reshape(1 if bh_bcast else BH, 1 if q_bcast else Lq, Lk)
        mr = _pad_axis(m, 2, Lk_pad)                          # pad cols -> 0 (masked)

    # Per-step VMEM footprint accounting (double-buffered I/O + live f32 temps).
    mask_per_head = 0
    mask_fixed = 0
    if has_mask:
        mb = 2 * (tq if not q_bcast else 1) * Lk_pad          # int8, double-buffered
        if bh_bcast:
            mask_fixed = mb
        else:
            mask_per_head = mb
    per_head = (
        2 * (tq * D + Lk_pad * D + Lk_pad * Dv_pad            # inputs (x2 buffers)
             + tq * Dv_pad + tq * Lk_pad) * isz               # outputs (x2 buffers)
        + mask_per_head
        + 3 * tq * Lk_pad * 4                                 # scores / p / attn f32
        + tq * Dv_pad * 4                                     # f32 out accumulator
    )
    th = _pick_head_tile(BH, per_head, max(budget - mask_fixed, 0))

    footprint = th * per_head + mask_fixed
    vmem_limit = int(min(vmem_cap * 9 // 10, max(2 * footprint, 32 << 20)))

    # Grid order: Lq (j) innermost -- k/v index_maps depend only on i, so
    # consecutive j steps reuse the resident K/V block (no re-DMA).  Do NOT flip.
    grid = (BH // th, Lq // tq)

    in_specs = [
        pl.BlockSpec((th, tq, D), lambda i, j: (i, j, 0)),
        pl.BlockSpec((th, Lk_pad, D), lambda i, j: (i, 0, 0)),
        pl.BlockSpec((th, Lk_pad, Dv_pad), lambda i, j: (i, 0, 0)),
    ]
    args = [qr, kr, vr]
    if has_mask:
        m_th = 1 if bh_bcast else th
        m_tq = 1 if q_bcast else tq
        in_specs.append(
            pl.BlockSpec(
                (m_th, m_tq, Lk_pad),
                lambda i, j: (0 if bh_bcast else i, 0 if q_bcast else j, 0),
            )
        )
        args.append(mr)

    kernel = functools.partial(
        _sdpa_kernel,
        inv_temperature=1.0 / float(temperature),
        has_mask=has_mask,
        lk_valid=Lk,
        lk_padded=Lk_pad,
    )

    flops = 2 * BH * Lq * Lk_pad * D + 2 * BH * Lq * Lk_pad * Dv_pad
    bytes_accessed = (
        qr.size * isz + kr.size * isz + vr.size * isz
        + (mr.size if has_mask else 0)
        + BH * Lq * Dv_pad * isz + BH * Lq * Lk_pad * isz
    )
    cost = pl.CostEstimate(
        flops=int(flops),
        transcendentals=int(BH * Lq * Lk_pad),
        bytes_accessed=int(bytes_accessed),
    )

    out, attn = pl.pallas_call(
        kernel,
        out_shape=(
            jax.ShapeDtypeStruct((BH, Lq, Dv_pad), q.dtype),
            jax.ShapeDtypeStruct((BH, Lq, Lk_pad), q.dtype),
        ),
        grid_spec=pltpu.PrefetchScalarGridSpec(
            num_scalar_prefetch=0,
            grid=grid,
            in_specs=in_specs,
            out_specs=[
                pl.BlockSpec((th, tq, Dv_pad), lambda i, j: (i, j, 0)),
                pl.BlockSpec((th, tq, Lk_pad), lambda i, j: (i, j, 0)),
            ],
        ),
        compiler_params=pltpu.CompilerParams(
            dimension_semantics=("parallel", "parallel"),
            vmem_limit_bytes=vmem_limit,
        ),
        cost_estimate=cost,
    )(*args)

    if Dv_pad != Dv:
        out = out[:, :, :Dv]
    if Lk_pad != Lk:
        attn = attn[:, :, :Lk]
    return out.reshape(B, H, Lq, Dv), attn.reshape(B, H, Lq, Lk)


def _reference(q, k, v, temperature, mask=None):
    attn = jnp.matmul(q / temperature, jnp.swapaxes(k, 2, 3))
    if mask is not None:
        attn = jnp.where(mask == 0, -1e9, attn)
    attn = jax.nn.softmax(attn, axis=-1)
    out = jnp.matmul(attn, v)
    return out, attn


if __name__ == "__main__":
    key = jax.random.PRNGKey(0)
    kq, kk, kv, km1, km2 = jax.random.split(key, 5)

    B, H, Lq, Lk, D = 2, 4, 8, 8, 32
    temperature = float(D) ** 0.5

    q = jax.random.normal(kq, (B, H, Lq, D), dtype=jnp.float32)
    k = jax.random.normal(kk, (B, H, Lk, D), dtype=jnp.float32)
    v = jax.random.normal(kv, (B, H, Lk, D), dtype=jnp.float32)

    # 1) no-mask path: no mask tensor is materialized or DMA'd at all
    out, attn = scaled_dot_product_attention(q, k, v, temperature, mask=None)
    out = jax.block_until_ready(out)
    attn = jax.block_until_ready(attn)
    ref_out, ref_attn = _reference(q, k, v, temperature, mask=None)
    assert jnp.allclose(out, ref_out, atol=1e-2, rtol=1e-2), "output mismatch"
    assert jnp.allclose(attn, ref_attn, atol=1e-2, rtol=1e-2), "attn mismatch"

    # 2) full-rank mask, DMA'd as 1-byte int8 (keep >=1 unmasked key per row so
    #    the padded-softmax edge case of an all-masked row is not exercised)
    mask = (jax.random.uniform(km1, (B, H, Lq, Lk)) > 0.3)
    mask = mask.at[..., 0].set(True).astype(jnp.float32)
    out_m, attn_m = scaled_dot_product_attention(q, k, v, temperature, mask=mask)
    out_m = jax.block_until_ready(out_m)
    attn_m = jax.block_until_ready(attn_m)
    ref_out_m, ref_attn_m = _reference(q, k, v, temperature, mask=mask)
    assert jnp.allclose(out_m, ref_out_m, atol=1e-2, rtol=1e-2), "masked output mismatch"
    assert jnp.allclose(attn_m, ref_attn_m, atol=1e-2, rtol=1e-2), "masked attn mismatch"

    # 3) key-padding mask (B,1,1,Lk): stays broadcast-shaped (per-row int8)
    kp = (jax.random.uniform(km2, (B, 1, 1, Lk)) > 0.3)
    kp = kp.at[..., 0].set(True).astype(jnp.float32)
    out_k, attn_k = scaled_dot_product_attention(q, k, v, temperature, mask=kp)
    out_k = jax.block_until_ready(out_k)
    attn_k = jax.block_until_ready(attn_k)
    ref_out_k, ref_attn_k = _reference(q, k, v, temperature, mask=kp)
    assert jnp.allclose(out_k, ref_out_k, atol=1e-2, rtol=1e-2), "kp-masked output mismatch"
    assert jnp.allclose(attn_k, ref_attn_k, atol=1e-2, rtol=1e-2), "kp-masked attn mismatch"

    print("KERNEL_OK")
</pallas_src>

<mosaic_0001>
module attributes {stable_mosaic.version = 11 : i64} {
  func.func @_sdpa_kernel(%arg0: i32, %arg1: i32, %arg2: memref<4x8x32xf32, #tpu.memory_space<vmem>>, %arg3: memref<4x128x32xf32, #tpu.memory_space<vmem>>, %arg4: memref<4x128x128xf32, #tpu.memory_space<vmem>>, %arg5: memref<4x8x128xf32, #tpu.memory_space<vmem>>, %arg6: memref<4x8x128xf32, #tpu.memory_space<vmem>>) attributes {dimension_semantics = [#tpu.dimension_semantics<parallel>, #tpu.dimension_semantics<parallel>], iteration_bounds = array<i64: 2, 1>, scalar_prefetch = 0 : i64, scratch_operands = 0 : i64, tpu.core_type = #tpu.core_type<tc>, window_params = [{transform_indices = @transform_0, window_bounds = array<i64: 4, 8, 32>}, {transform_indices = @transform_1, window_bounds = array<i64: 4, 128, 32>}, {transform_indices = @transform_2, window_bounds = array<i64: 4, 128, 128>}, {transform_indices = @transform_3, window_bounds = array<i64: 4, 8, 128>}, {transform_indices = @transform_4, window_bounds = array<i64: 4, 8, 128>}]} {
    %c0 = arith.constant 0 : index
    %c0_0 = arith.constant 0 : index
    %c0_1 = arith.constant 0 : index
    %0 = vector.load %arg2[%c0, %c0_0, %c0_1] : memref<4x8x32xf32, #tpu.memory_space<vmem>>, vector<4x8x32xf32>
    %cst = arith.constant 0.176776692 : f32
    %1 = vector.broadcast %cst : f32 to vector<4x8x32xf32>
    %2 = arith.mulf %0, %1 : vector<4x8x32xf32>
    %c0_2 = arith.constant 0 : index
    %c0_3 = arith.constant 0 : index
    %c0_4 = arith.constant 0 : index
    %3 = vector.load %arg3[%c0_2, %c0_3, %c0_4] : memref<4x128x32xf32, #tpu.memory_space<vmem>>, vector<4x128x32xf32>
    %c0_5 = arith.constant 0 : index
    %c0_6 = arith.constant 0 : index
    %c0_7 = arith.constant 0 : index
    %4 = vector.load %arg4[%c0_5, %c0_6, %c0_7] : memref<4x128x128xf32, #tpu.memory_space<vmem>>, vector<4x128x128xf32>
    "tpu.trace_start"() <{level = 10 : i32, message = "hqd,hkd->hqk"}> : () -> ()
    %cst_8 = arith.constant dense<0.000000e+00> : vector<4x8x128xf32>
    %5 = tpu.matmul %2, %3, %cst_8 {dimension_numbers = #tpu.dot_dimension_numbers<[2], [2], [1], [1], [0, 0, 0, 1, 1, 1], [0], [0]>} : vector<4x8x32xf32>, vector<4x128x32xf32>, vector<4x8x128xf32> -> vector<4x8x128xf32>
    "tpu.trace_stop"() : () -> ()
    %6 = tpu.iota {dimensions = array<i32: 2>} : vector<4x8x128xi32>
    %c8_i32 = arith.constant 8 : i32
    %7 = vector.broadcast %c8_i32 : i32 to vector<4x8x128xi32>
    %8 = arith.cmpi slt, %6, %7 : vector<4x8x128xi32>
    %cst_9 = arith.constant -1.000000e+09 : f32
    %9 = vector.broadcast %cst_9 : f32 to vector<4x8x128xf32>
    %10 = arith.select %8, %5, %9 : vector<4x8x128xi1>, vector<4x8x128xf32>
    %cst_10 = arith.constant dense<0xFF800000> : vector<4x8xf32>
    %11 = vector.multi_reduction <maximumf>, %10, %cst_10 [2] : vector<4x8x128xf32> to vector<4x8xf32>
    %12 = vector.shape_cast %11 : vector<4x8xf32> to vector<4x8x1xf32>
    %13 = vector.broadcast %12 : vector<4x8x1xf32> to vector<4x8x128xf32>
    %14 = arith.subf %10, %13 : vector<4x8x128xf32>
    %15 = math.exp %14 : vector<4x8x128xf32>
    %cst_11 = arith.constant dense<0.000000e+00> : vector<4x8xf32>
    %16 = vector.multi_reduction <add>, %15, %cst_11 [2] : vector<4x8x128xf32> to vector<4x8xf32>
    %17 = vector.shape_cast %16 : vector<4x8xf32> to vector<4x8x1xf32>
    %18 = tpu.reciprocal %17 : vector<4x8x1xf32> -> vector<4x8x1xf32>
    %19 = vector.broadcast %18 : vector<4x8x1xf32> to vector<4x8x128xf32>
    %20 = arith.mulf %15, %19 : vector<4x8x128xf32>
    "tpu.trace_start"() <{level = 10 : i32, message = "hqk,hkd->hqd"}> : () -> ()
    %cst_12 = arith.constant dense<0.000000e+00> : vector<4x8x128xf32>
    %21 = tpu.matmul %20, %4, %cst_12 {dimension_numbers = #tpu.dot_dimension_numbers<[2], [1], [1], [2], [0, 0, 0, 1, 1, 2], [0], [0]>} : vector<4x8x128xf32>, vector<4x128x128xf32>, vector<4x8x128xf32> -> vector<4x8x128xf32>
    "tpu.trace_stop"() : () -> ()
    %c0_13 = arith.constant 0 : index
    %c0_14 = arith.constant 0 : index
    %c0_15 = arith.constant 0 : index
    %22 = vector.load %arg5[%c0_13, %c0_14, %c0_15] : memref<4x8x128xf32, #tpu.memory_space<vmem>>, vector<4x8x128xf32>
    tpu.vector_store %arg5[%c0_13, %c0_14, %c0_15], %21 {strides = array<i32>} : memref<4x8x128xf32, #tpu.memory_space<vmem>>, vector<4x8x128xf32>,
    %c0_16 = arith.constant 0 : index
    %c0_17 = arith.constant 0 : index
    %c0_18 = arith.constant 0 : index
    %23 = vector.load %arg6[%c0_16, %c0_17, %c0_18] : memref<4x8x128xf32, #tpu.memory_space<vmem>>, vector<4x8x128xf32>
    tpu.vector_store %arg6[%c0_16, %c0_17, %c0_18], %20 {strides = array<i32>} : memref<4x8x128xf32, #tpu.memory_space<vmem>>, vector<4x8x128xf32>,
    return
  }
  func.func @transform_0(%arg0: i32, %arg1: i32) -> (i32, i32, i32) {
    %c0_i32 = arith.constant 0 : i32
    %c0_i32_0 = arith.constant 0 : i32
    return %arg0, %arg1, %c0_i32 : i32, i32, i32
  }
  func.func @transform_1(%arg0: i32, %arg1: i32) -> (i32, i32, i32) {
    %c0_i32 = arith.constant 0 : i32
    %c0_i32_0 = arith.constant 0 : i32
    %c0_i32_1 = arith.constant 0 : i32
    return %arg0, %c0_i32, %c0_i32_0 : i32, i32, i32
  }
  func.func @transform_2(%arg0: i32, %arg1: i32) -> (i32, i32, i32) {
    %c0_i32 = arith.constant 0 : i32
    %c0_i32_0 = arith.constant 0 : i32
    %c0_i32_1 = arith.constant 0 : i32
    return %arg0, %c0_i32, %c0_i32_0 : i32, i32, i32
  }
  func.func @transform_3(%arg0: i32, %arg1: i32) -> (i32, i32, i32) {
    %c0_i32 = arith.constant 0 : i32
    %c0_i32_0 = arith.constant 0 : i32
    return %arg0, %arg1, %c0_i32 : i32, i32, i32
  }
  func.func @transform_4(%arg0: i32, %arg1: i32) -> (i32, i32, i32) {
    %c0_i32 = arith.constant 0 : i32
    %c0_i32_0 = arith.constant 0 : i32
    return %arg0, %arg1, %c0_i32 : i32, i32, i32
  }
}

</mosaic_0001>

<llo_original>
// kernel: tpu_custom_call.1
$region0: #{tpu_custom_call.1}
  #allocation0 [shape = 'u32[]', space=smem, size = 0x4, offset = 0x4, fixed_abs, tag = 'smem constant byte address 0x4 - core index']
  #allocation1 [shape = 'u32[144,128]{1,0:T(1,128)}', space=vmem, size = 0x12000, scoped, tag = 'internal scratch']
  %s0 = inlined_call_operand.vmem [shape: f32[8,8,32], index: 0, kind: input, shape index: {}]
  %s1 = inlined_call_operand.vmem [shape: f32[8,128,32], index: 1, kind: input, shape index: {}]
  %s2 = inlined_call_operand.vmem [shape: f32[8,128,128], index: 2, kind: input, shape index: {}]
  %s3 = inlined_call_operand.hbm [shape: f32[8,8,128], index: 3, kind: output, shape index: {0}]
  %s4 = inlined_call_operand.hbm [shape: f32[8,8,128], index: 4, kind: output, shape index: {1}]
  %5 = xla_tuple %s3, %s4
  %s6 = sld [smem:[#allocation0]]
  $region53: #{tpu_custom_call.1} parent=0
    _
  %s8 = ssub.s32 1, %s6
  %s9 = scalar_select 0, %s8, %s6
  $region1: #{tpu_custom_call.1} parent=0
    #allocation2 [shape = 'u8[32768]{0}', space=vmem, size = 0x8000, scoped, tag = 'output window, operand 0']
    #allocation3 [shape = 's32[2]{0}', space=sflag, size = 0x8, scoped, tag = 'scoped memory for tpu_custom_call.1']
    #allocation4 [shape = 'u8[32768]{0}', space=vmem, size = 0x8000, scoped, tag = 'output window, operand 1']
    #allocation5 [shape = 's32[2]{0}', space=sflag, size = 0x8, scoped, tag = 'scoped memory for tpu_custom_call.1']
    %10 = vsyncpa [#allocation3], 0
    %s11 = scalar_lea.sflag [#allocation3], 1
    %12 = vsyncpa %s11, 0
    %13 = vsyncpa [#allocation5], 0
    %s14 = scalar_lea.sflag [#allocation5], 1
    %15 = vsyncpa %s14, 0
    loop: start=0, step=1, limit=4
    $region2: #{tpu_custom_call.1} parent=1 // loop_pre_header
      _
    $region3: #{tpu_custom_call.1} parent=1 // loop_header
      %s17 = sphi 0, %s21
      %p18 = scmp.ge.s32.totalorder %s17, 4
      %s24 = sphi 0, %s36
      %s25 = sphi 0, %s32
      %s26 = sphi 0, %s24
      %s27 = sphi 0, %s25
      %s28 = sphi 0, %s26
      %s29 = sphi 0, %s27
      %s41 = sphi 0, %s43
      %s44 = sphi 0, %s41
      %s45 = sphi 0, %s44
      %s61 = sphi 0, %s45
      %s67 = sphi 0, %s69
      %s70 = sphi 0, %s67
      %s71 = sphi 0, %s70
      %s87 = sphi 0, %s71
      %s93 = sphi 0, %s95
      %s96 = sphi 0, %s93
      %s97 = sphi 0, %s96
      %s113 = sphi 0, %s97
      %s121 = sphi 0, %s123
      %s124 = sphi 0, %s121
      %s125 = sphi 0, %s124
      %s141 = sphi 0, %s125
      %s149 = sphi 0, %s151
      %s152 = sphi 0, %s149
      %s153 = sphi 0, %s152
      %s169 = sphi 0, %s153
    $region4: #{tpu_custom_call.1} parent=1 // loop_header_branch
      %20 = sbr.rel (%p18) target = $region8
    $region5: #{tpu_custom_call.1} parent=1 // loop_body
      %s22 = ssub.s32 %s17, 1
      %s23 = ssub.s32 %s17, 2
      %s30 = sadd.s32 1, %s25
      %p31 = scmp.ge.s32.totalorder %s30, 1
      %s32 = scalar_select %p31, 0, %s30
      %s33 = sadd.s32 1, %s24
      %s34 = scalar_select %p31, %s33, %s24
      %p35 = scmp.ge.s32.totalorder %s34, 2
      %s36 = scalar_select %p35, 0, %s34
      %s37 = ssub.s32 %s24, %s36
      %s38 = ssub.s32 %s25, %s32
      %s39 = sor.u32 %s37, %s38
      %p40 = scmp.eq.s32.totalorder %s39, 0
      %s42 = sadd.s32 %s41, 1
      %s43 = scalar_select %p40, %s41, %s42
      %p46 = pneg %p40
      %p47 = scmp.eq.s32.totalorder %s17, 1
      %p48 = por %p46, %p47
      %p49 = scmp.ne.s32.totalorder %s41, %s44
      %p50 = scmp.eq.s32.totalorder %s17, 0
      %p51 = por %p49, %p50
      %p52 = scmp.ne.s32.totalorder %s41, %s44
      %p53 = scmp.eq.s32.totalorder %s22, 1
      %p54 = por %p52, %p53
      %p55 = scmp.ne.s32.totalorder %s44, %s45
      %p56 = scmp.eq.s32.totalorder %s22, 0
      %p57 = por %p55, %p56
      %p58 = scmp.ne.s32.totalorder %s44, %s45
      %p59 = scmp.eq.s32.totalorder %s23, 1
      %p60 = por %p58, %p59
      %p62 = scmp.ne.s32.totalorder %s45, %s61
      %p63 = scmp.eq.s32.totalorder %s23, 0
      %p64 = por %p62, %p63
      %s65 = ssub.s32 %s24, %s36
      %p66 = scmp.eq.s32.totalorder %s65, 0
      %s68 = sadd.s32 %s67, 1
      %s69 = scalar_select %p66, %s67, %s68
      %p72 = pneg %p66
      %p73 = scmp.eq.s32.totalorder %s17, 1
      %p74 = por %p72, %p73
      %p75 = scmp.ne.s32.totalorder %s67, %s70
      %p76 = scmp.eq.s32.totalorder %s17, 0
      %p77 = por %p75, %p76
      %p78 = scmp.ne.s32.totalorder %s67, %s70
      %p79 = scmp.eq.s32.totalorder %s22, 1
      %p80 = por %p78, %p79
      %p81 = scmp.ne.s32.totalorder %s70, %s71
      %p82 = scmp.eq.s32.totalorder %s22, 0
      %p83 = por %p81, %p82
      %p84 = scmp.ne.s32.totalorder %s70, %s71
      %p85 = scmp.eq.s32.totalorder %s23, 1
      %p86 = por %p84, %p85
      %p88 = scmp.ne.s32.totalorder %s71, %s87
      %p89 = scmp.eq.s32.totalorder %s23, 0
      %p90 = por %p88, %p89
      %s91 = ssub.s32 %s24, %s36
      %p92 = scmp.eq.s32.totalorder %s91, 0
      %s94 = sadd.s32 %s93, 1
      %s95 = scalar_select %p92, %s93, %s94
      %p98 = pneg %p92
      %p99 = scmp.eq.s32.totalorder %s17, 1
      %p100 = por %p98, %p99
      %p101 = scmp.ne.s32.totalorder %s93, %s96
      %p102 = scmp.eq.s32.totalorder %s17, 0
      %p103 = por %p101, %p102
      %p104 = scmp.ne.s32.totalorder %s93, %s96
      %p105 = scmp.eq.s32.totalorder %s22, 1
      %p106 = por %p104, %p105
      %p107 = scmp.ne.s32.totalorder %s96, %s97
      %p108 = scmp.eq.s32.totalorder %s22, 0
      %p109 = por %p107, %p108
      %p110 = scmp.ne.s32.totalorder %s96, %s97
      %p111 = scmp.eq.s32.totalorder %s23, 1
      %p112 = por %p110, %p111
      %p114 = scmp.ne.s32.totalorder %s97, %s113
      %p115 = scmp.eq.s32.totalorder %s23, 0
      %p116 = por %p114, %p115
      %s117 = ssub.s32 %s24, %s36
      %s118 = ssub.s32 %s25, %s32
      %s119 = sor.u32 %s117, %s118
      %p120 = scmp.eq.s32.totalorder %s119, 0
      %s122 = sadd.s32 %s121, 1
      %s123 = scalar_select %p120, %s121, %s122
      %p126 = pneg %p120
      %p127 = scmp.eq.s32.totalorder %s17, 1
      %p128 = por %p126, %p127
      %p129 = scmp.ne.s32.totalorder %s121, %s124
      %p130 = scmp.eq.s32.totalorder %s17, 0
      %p131 = por %p129, %p130
      %p132 = scmp.ne.s32.totalorder %s121, %s124
      %p133 = scmp.eq.s32.totalorder %s22, 1
      %p134 = por %p132, %p133
      %p135 = scmp.ne.s32.totalorder %s124, %s125
      %p136 = scmp.eq.s32.totalorder %s22, 0
      %p137 = por %p135, %p136
      %p138 = scmp.ne.s32.totalorder %s124, %s125
      %p139 = scmp.eq.s32.totalorder %s23, 1
      %p140 = por %p138, %p139
      %p142 = scmp.ne.s32.totalorder %s125, %s141
      %p143 = scmp.eq.s32.totalorder %s23, 0
      %p144 = por %p142, %p143
      %s145 = ssub.s32 %s24, %s36
      %s146 = ssub.s32 %s25, %s32
      %s147 = sor.u32 %s145, %s146
      %p148 = scmp.eq.s32.totalorder %s147, 0
      %s150 = sadd.s32 %s149, 1
      %s151 = scalar_select %p148, %s149, %s150
      %p154 = pneg %p148
      %p155 = scmp.eq.s32.totalorder %s17, 1
      %p156 = por %p154, %p155
      %p157 = scmp.ne.s32.totalorder %s149, %s152
      %p158 = scmp.eq.s32.totalorder %s17, 0
      %p159 = por %p157, %p158
      %p160 = scmp.ne.s32.totalorder %s149, %s152
      %p161 = scmp.eq.s32.totalorder %s22, 1
      %p162 = por %p160, %p161
      %p163 = scmp.ne.s32.totalorder %s152, %s153
      %p164 = scmp.eq.s32.totalorder %s22, 0
      %p165 = por %p163, %p164
      %p166 = scmp.ne.s32.totalorder %s152, %s153
      %p167 = scmp.eq.s32.totalorder %s23, 1
      %p168 = por %p166, %p167
      %p170 = scmp.ne.s32.totalorder %s153, %s169
      %p171 = scmp.eq.s32.totalorder %s23, 0
      %p172 = por %p170, %p171
      %p173 = scmp.le.s32.totalorder 1, %s17
      %p174 = scmp.lt.s32.totalorder %s17, 3
      %p175 = pnand %p173, %p174
      %p176 = pneg %p175
      // Predicated region
      $region9: #{tpu_custom_call.1} parent=5 // pred_check
        _
      $region10: #{tpu_custom_call.1} parent=5 // pred_check_branch
        %178 = sbr.rel (%p175) target = $region12
      $region11: #{tpu_custom_call.1} parent=5 // pred_region
        %s179 = ssub.s32 %s17, 1
      $region12: #{tpu_custom_call.1} parent=5 // pred_fallthru
        _
      %p180 = scmp.lt.s32.totalorder %s17, 2
      // Predicated region
      $region13: #{tpu_custom_call.1} parent=5 // pred_check
        %p181 = pneg %p180
      $region14: #{tpu_custom_call.1} parent=5 // pred_check_branch
        %183 = sbr.rel (%p181) target = $region16
      $region15: #{tpu_custom_call.1} parent=5 // pred_region
        // Predicated region
        $region17: #{tpu_custom_call.1} parent=15 // pred_check
          %p184 = pneg %p51
        $region18: #{tpu_custom_call.1} parent=15 // pred_check_branch
          %186 = sbr.rel (%p184) target = $region20
        $region19: #{tpu_custom_call.1} parent=15 // pred_region
          %s187 = smul.u32 4, %s24
          %p188 = scmp.lt.s32.totalorder %s187, 7
          %s189 = scalar_select %p188, %s187, 7
          %p190 = scmp.lt.s32.totalorder %s25, 0
          %s191 = scalar_select %p190, %s25, 0
          %s192 = sadd.s32 %s191, %s189
          %s193 = smul.addr %s192, 8
          %s194 = scalar_lea.vmem %s0, %s193
          %s195 = smul.u32 4, %s24
        $region20: #{tpu_custom_call.1} parent=15 // pred_fallthru
          _
        // Predicated region
        $region21: #{tpu_custom_call.1} parent=15 // pred_check
          %p196 = pneg %p77
        $region22: #{tpu_custom_call.1} parent=15 // pred_check_branch
          %198 = sbr.rel (%p196) target = $region24
        $region23: #{tpu_custom_call.1} parent=15 // pred_region
          %s199 = smul.u32 4, %s24
          %p200 = scmp.lt.s32.totalorder %s199, 7
          %s201 = scalar_select %p200, %s199, 7
          %s202 = smul.addr %s201, 16
          %s203 = smul.addr %s202, 8
          %s204 = scalar_lea.vmem %s1, %s203
          %s205 = smul.u32 4, %s24
        $region24: #{tpu_custom_call.1} parent=15 // pred_fallthru
          _
        // Predicated region
        $region25: #{tpu_custom_call.1} parent=15 // pred_check
          %p206 = pneg %p103
        $region26: #{tpu_custom_call.1} parent=15 // pred_check_branch
          %208 = sbr.rel (%p206) target = $region28
        $region27: #{tpu_custom_call.1} parent=15 // pred_region
          %s209 = smul.u32 4, %s24
          %p210 = scmp.lt.s32.totalorder %s209, 7
          %s211 = scalar_select %p210, %s209, 7
          %s212 = smul.addr %s211, 16
          %s213 = smul.addr %s212, 8
          %s214 = scalar_lea.vmem %s2, %s213
          %s215 = smul.u32 4, %s24
        $region28: #{tpu_custom_call.1} parent=15 // pred_fallthru
          _
      $region16: #{tpu_custom_call.1} parent=5 // pred_fallthru
        _
      %p216 = scmp.le.s32.totalorder 1, %s17
      %p217 = scmp.lt.s32.totalorder %s17, 3
      %p218 = pnand %p216, %p217
      %p219 = pneg %p218
      // Predicated region
      $region29: #{tpu_custom_call.1} parent=5 // pred_check
        _
      $region30: #{tpu_custom_call.1} parent=5 // pred_check_branch
        %221 = sbr.rel (%p218) target = $region32
      $region31: #{tpu_custom_call.1} parent=5 // pred_region
        %s222 = ssub.s32 %s17, 1
        %s223 = smul.u32 4, %s26
        %p224 = scmp.lt.s32.totalorder %s223, 7
        %s225 = scalar_select %p224, %s223, 7
        %p226 = scmp.lt.s32.totalorder %s27, 0
        %s227 = scalar_select %p226, %s27, 0
        %s228 = sadd.s32 %s227, %s225
        %s229 = smul.addr %s228, 8
        %s230 = scalar_lea.vmem %s0, %s229
        %p231 = pneg %p57
        %p232 = pneg %p54
        %s233 = smul.u32 4, %s26
        %p234 = scmp.lt.s32.totalorder %s233, 7
        %s235 = scalar_select %p234, %s233, 7
        %s236 = smul.addr %s235, 16
        %s237 = smul.addr %s236, 8
        %s238 = scalar_lea.vmem %s1, %s237
        %p239 = pneg %p83
        %p240 = pneg %p80
        %s241 = smul.u32 4, %s26
        %p242 = scmp.lt.s32.totalorder %s241, 7
        %s243 = scalar_select %p242, %s241, 7
        %s244 = smul.addr %s243, 16
        %s245 = smul.addr %s244, 8
        %s246 = scalar_lea.vmem %s2, %s245
        %p247 = pneg %p109
        %p248 = pneg %p106
        %p249 = pneg %p137
        %p250 = pneg %p134
        %s251 = sand.u32 %s124, 1
        %s252 = scalar_lea.sflag [#allocation3], %s251
        %s253 = sand.u32 %s124, 1
        %s254 = smul.addr %s253, 32
        %s255 = scalar_lea.vmem [#allocation2], %s254
        %p256 = pneg %p165
        %p257 = pneg %p162
        %s258 = sand.u32 %s152, 1
        %s259 = scalar_lea.sflag [#allocation5], %s258
        %s260 = sand.u32 %s152, 1
        %s261 = smul.addr %s260, 32
        %s262 = scalar_lea.vmem [#allocation4], %s261
        %s263 = smul.u32 4, %s26
        %p264 = scmp.lt.s32.totalorder %s263, 7
        %s265 = scalar_select %p264, %s263, 7
        %p266 = scmp.lt.s32.totalorder %s27, 0
        %s267 = scalar_select %p266, %s27, 0
        %s268 = sadd.s32 %s267, %s265
        %s269 = smul.addr %s268, 8
        %s270 = scalar_lea.vmem %s0, %s269
        %s271 = smul.u32 4, %s26
        %s272 = smul.u32 4, %s26
        %p273 = scmp.lt.s32.totalorder %s272, 7
        %s274 = scalar_select %p273, %s272, 7
        %s275 = smul.addr %s274, 16
        %s276 = smul.addr %s275, 8
        %s277 = scalar_lea.vmem %s1, %s276
        %s278 = smul.u32 4, %s26
        %s279 = smul.u32 4, %s26
        %p280 = scmp.lt.s32.totalorder %s279, 7
        %s281 = scalar_select %p280, %s279, 7
        %s282 = smul.addr %s281, 16
        %s283 = smul.addr %s282, 8
        %s284 = scalar_lea.vmem %s2, %s283
        %s285 = smul.u32 4, %s26
        %s286 = smul.u32 4, %s26
        %s287 = smul.u32 4, %s26
        %v288 = vld [vmem:[%s270] sm:$0xff]
        %v289 = vld [vmem:[%s270 + $0x8] sm:$0xff]
        %v290 = vld [vmem:[%s270 + $0x10] sm:$0xff]
        %v291 = vld [vmem:[%s270 + $0x18] sm:$0xff]
        %v292 = vmul.f32 %v288, 0.17677669
        %v293 = vmul.f32 %v289, 0.17677669
        %v294 = vmul.f32 %v290, 0.17677669
        %v295 = vmul.f32 %v291, 0.17677669
        %v296 = vld [vmem:[%s277] sm:$0xff]
        %v297 = vld [vmem:[%s277 + $0x8] sm:$0xff]
        %v298 = vld [vmem:[%s277 + $0x10] sm:$0xff]
        %v299 = vld [vmem:[%s277 + $0x18] sm:$0xff]
        %v300 = vld [vmem:[%s277 + $0x20] sm:$0xff]
        %v301 = vld [vmem:[%s277 + $0x28] sm:$0xff]
        %v302 = vld [vmem:[%s277 + $0x30] sm:$0xff]
        %v303 = vld [vmem:[%s277 + $0x38] sm:$0xff]
        %v304 = vld [vmem:[%s277 + $0x40] sm:$0xff]
        %v305 = vld [vmem:[%s277 + $0x48] sm:$0xff]
        %v306 = vld [vmem:[%s277 + $0x50] sm:$0xff]
        %v307 = vld [vmem:[%s277 + $0x58] sm:$0xff]
        %v308 = vld [vmem:[%s277 + $0x60] sm:$0xff]
        %v309 = vld [vmem:[%s277 + $0x68] sm:$0xff]
        %v310 = vld [vmem:[%s277 + $0x70] sm:$0xff]
        %v311 = vld [vmem:[%s277 + $0x78] sm:$0xff]
        %v312 = vld [vmem:[%s277 + $0x80] sm:$0xff]
        %v313 = vld [vmem:[%s277 + $0x88] sm:$0xff]
        %v314 = vld [vmem:[%s277 + $0x90] sm:$0xff]
        %v315 = vld [vmem:[%s277 + $0x98] sm:$0xff]
        %v316 = vld [vmem:[%s277 + $0xa0] sm:$0xff]
        %v317 = vld [vmem:[%s277 + $0xa8] sm:$0xff]
        %v318 = vld [vmem:[%s277 + $0xb0] sm:$0xff]
        %v319 = vld [vmem:[%s277 + $0xb8] sm:$0xff]
        %v320 = vld [vmem:[%s277 + $0xc0] sm:$0xff]
        %v321 = vld [vmem:[%s277 + $0xc8] sm:$0xff]
        %v322 = vld [vmem:[%s277 + $0xd0] sm:$0xff]
        %v323 = vld [vmem:[%s277 + $0xd8] sm:$0xff]
        %v324 = vld [vmem:[%s277 + $0xe0] sm:$0xff]
        %v325 = vld [vmem:[%s277 + $0xe8] sm:$0xff]
        %v326 = vld [vmem:[%s277 + $0xf0] sm:$0xff]
        %v327 = vld [vmem:[%s277 + $0xf8] sm:$0xff]
        %v328 = vld [vmem:[%s277 + $0x100] sm:$0xff]
        %v329 = vld [vmem:[%s277 + $0x108] sm:$0xff]
        %v330 = vld [vmem:[%s277 + $0x110] sm:$0xff]
        %v331 = vld [vmem:[%s277 + $0x118] sm:$0xff]
        %v332 = vld [vmem:[%s277 + $0x120] sm:$0xff]
        %v333 = vld [vmem:[%s277 + $0x128] sm:$0xff]
        %v334 = vld [vmem:[%s277 + $0x130] sm:$0xff]
        %v335 = vld [vmem:[%s277 + $0x138] sm:$0xff]
        %v336 = vld [vmem:[%s277 + $0x140] sm:$0xff]
        %v337 = vld [vmem:[%s277 + $0x148] sm:$0xff]
        %v338 = vld [vmem:[%s277 + $0x150] sm:$0xff]
        %v339 = vld [vmem:[%s277 + $0x158] sm:$0xff]
        %v340 = vld [vmem:[%s277 + $0x160] sm:$0xff]
        %v341 = vld [vmem:[%s277 + $0x168] sm:$0xff]
        %v342 = vld [vmem:[%s277 + $0x170] sm:$0xff]
        %v343 = vld [vmem:[%s277 + $0x178] sm:$0xff]
        %v344 = vld [vmem:[%s277 + $0x180] sm:$0xff]
        %v345 = vld [vmem:[%s277 + $0x188] sm:$0xff]
        %v346 = vld [vmem:[%s277 + $0x190] sm:$0xff]
        %v347 = vld [vmem:[%s277 + $0x198] sm:$0xff]
        %v348 = vld [vmem:[%s277 + $0x1a0] sm:$0xff]
        %v349 = vld [vmem:[%s277 + $0x1a8] sm:$0xff]
        %v350 = vld [vmem:[%s277 + $0x1b0] sm:$0xff]
        %v351 = vld [vmem:[%s277 + $0x1b8] sm:$0xff]
        %v352 = vld [vmem:[%s277 + $0x1c0] sm:$0xff]
        %v353 = vld [vmem:[%s277 + $0x1c8] sm:$0xff]
        %v354 = vld [vmem:[%s277 + $0x1d0] sm:$0xff]
        %v355 = vld [vmem:[%s277 + $0x1d8] sm:$0xff]
        %v356 = vld [vmem:[%s277 + $0x1e0] sm:$0xff]
        %v357 = vld [vmem:[%s277 + $0x1e8] sm:$0xff]
        %v358 = vld [vmem:[%s277 + $0x1f0] sm:$0xff]
        %v359 = vld [vmem:[%s277 + $0x1f8] sm:$0xff]
        %v360 = vld [vmem:[%s284] sm:$0xff]
        %v361 = vld [vmem:[%s284 + $0x8] sm:$0xff]
        %v362 = vld [vmem:[%s284 + $0x10] sm:$0xff]
        %v363 = vld [vmem:[%s284 + $0x18] sm:$0xff]
        %v364 = vld [vmem:[%s284 + $0x20] sm:$0xff]
        %v365 = vld [vmem:[%s284 + $0x28] sm:$0xff]
        %v366 = vld [vmem:[%s284 + $0x30] sm:$0xff]
        %v367 = vld [vmem:[%s284 + $0x38] sm:$0xff]
        %v368 = vld [vmem:[%s284 + $0x40] sm:$0xff]
        %v369 = vld [vmem:[%s284 + $0x48] sm:$0xff]
        %v370 = vld [vmem:[%s284 + $0x50] sm:$0xff]
        %v371 = vld [vmem:[%s284 + $0x58] sm:$0xff]
        %v372 = vld [vmem:[%s284 + $0x60] sm:$0xff]
        %v373 = vld [vmem:[%s284 + $0x68] sm:$0xff]
        %v374 = vld [vmem:[%s284 + $0x70] sm:$0xff]
        %v375 = vld [vmem:[%s284 + $0x78] sm:$0xff]
        %v376 = vld [vmem:[%s284 + $0x80] sm:$0xff]
        %v377 = vld [vmem:[%s284 + $0x88] sm:$0xff]
        %v378 = vld [vmem:[%s284 + $0x90] sm:$0xff]
        %v379 = vld [vmem:[%s284 + $0x98] sm:$0xff]
        %v380 = vld [vmem:[%s284 + $0xa0] sm:$0xff]
        %v381 = vld [vmem:[%s284 + $0xa8] sm:$0xff]
        %v382 = vld [vmem:[%s284 + $0xb0] sm:$0xff]
        %v383 = vld [vmem:[%s284 + $0xb8] sm:$0xff]
        %v384 = vld [vmem:[%s284 + $0xc0] sm:$0xff]
        %v385 = vld [vmem:[%s284 + $0xc8] sm:$0xff]
        %v386 = vld [vmem:[%s284 + $0xd0] sm:$0xff]
        %v387 = vld [vmem:[%s284 + $0xd8] sm:$0xff]
        %v388 = vld [vmem:[%s284 + $0xe0] sm:$0xff]
        %v389 = vld [vmem:[%s284 + $0xe8] sm:$0xff]
        %v390 = vld [vmem:[%s284 + $0xf0] sm:$0xff]
        %v391 = vld [vmem:[%s284 + $0xf8] sm:$0xff]
        %v392 = vld [vmem:[%s284 + $0x100] sm:$0xff]
        %v393 = vld [vmem:[%s284 + $0x108] sm:$0xff]
        %v394 = vld [vmem:[%s284 + $0x110] sm:$0xff]
        %v395 = vld [vmem:[%s284 + $0x118] sm:$0xff]
        %v396 = vld [vmem:[%s284 + $0x120] sm:$0xff]
        %v397 = vld [vmem:[%s284 + $0x128] sm:$0xff]
        %v398 = vld [vmem:[%s284 + $0x130] sm:$0xff]
        %v399 = vld [vmem:[%s284 + $0x138] sm:$0xff]
        %v400 = vld [vmem:[%s284 + $0x140] sm:$0xff]
        %v401 = vld [vmem:[%s284 + $0x148] sm:$0xff]
        %v402 = vld [vmem:[%s284 + $0x150] sm:$0xff]
        %v403 = vld [vmem:[%s284 + $0x158] sm:$0xff]
        %v404 = vld [vmem:[%s284 + $0x160] sm:$0xff]
        %v405 = vld [vmem:[%s284 + $0x168] sm:$0xff]
        %v406 = vld [vmem:[%s284 + $0x170] sm:$0xff]
        %v407 = vld [vmem:[%s284 + $0x178] sm:$0xff]
        %v408 = vld [vmem:[%s284 + $0x180] sm:$0xff]
        %v409 = vld [vmem:[%s284 + $0x188] sm:$0xff]
        %v410 = vld [vmem:[%s284 + $0x190] sm:$0xff]
        %v411 = vld [vmem:[%s284 + $0x198] sm:$0xff]
        %v412 = vld [vmem:[%s284 + $0x1a0] sm:$0xff]
        %v413 = vld [vmem:[%s284 + $0x1a8] sm:$0xff]
        %v414 = vld [vmem:[%s284 + $0x1b0] sm:$0xff]
        %v415 = vld [vmem:[%s284 + $0x1b8] sm:$0xff]
        %v416 = vld [vmem:[%s284 + $0x1c0] sm:$0xff]
        %v417 = vld [vmem:[%s284 + $0x1c8] sm:$0xff]
        %v418 = vld [vmem:[%s284 + $0x1d0] sm:$0xff]
        %v419 = vld [vmem:[%s284 + $0x1d8] sm:$0xff]
        %v420 = vld [vmem:[%s284 + $0x1e0] sm:$0xff]
        %v421 = vld [vmem:[%s284 + $0x1e8] sm:$0xff]
        %v422 = vld [vmem:[%s284 + $0x1f0] sm:$0xff]
        %v423 = vld [vmem:[%s284 + $0x1f8] sm:$0xff]
        %vm424 = vcmask 261120
        %v426 = vsel %vm424, %v292, 0
        %v429 = vsel %vm424, %v296, 0
        %v432 = vsel %vm424, %v297, 0
        %v435 = vsel %vm424, %v298, 0
        %v438 = vsel %vm424, %v299, 0
        %v441 = vsel %vm424, %v300, 0
        %v444 = vsel %vm424, %v301, 0
        %v447 = vsel %vm424, %v302, 0
        %v450 = vsel %vm424, %v303, 0
        %v453 = vsel %vm424, %v304, 0
        %v456 = vsel %vm424, %v305, 0
        %v459 = vsel %vm424, %v306, 0
        %v462 = vsel %vm424, %v307, 0
        %v465 = vsel %vm424, %v308, 0
        %v468 = vsel %vm424, %v309, 0
        %v471 = vsel %vm424, %v310, 0
        %v474 = vsel %vm424, %v311, 0
        %476 = vmatprep.subr.mxu0 0.0
        %477 = vmatpush1.xpose.msra.mxu0 %v429
        %478 = vmatprep.subr.mxu0 0.0
        %479 = vmatpush1.xpose.msra.mxu0 %v432
        %480 = vmatprep.subr.mxu0 0.0
        %481 = vmatpush1.xpose.msra.mxu0 %v435
        %482 = vmatprep.subr.mxu0 0.0
        %483 = vmatpush1.xpose.msra.mxu0 %v438
        %484 = vmatprep.subr.mxu0 0.0
        %485 = vmatpush1.xpose.msra.mxu0 %v441
        %486 = vmatprep.subr.mxu0 0.0
        %487 = vmatpush1.xpose.msra.mxu0 %v444
        %488 = vmatprep.subr.mxu0 0.0
        %489 = vmatpush1.xpose.msra.mxu0 %v447
        %490 = vmatprep.subr.mxu0 0.0
        %491 = vmatpush1.xpose.msra.mxu0 %v450
        %492 = vmatprep.subr.mxu0 0.0
        %493 = vmatpush1.xpose.msra.mxu0 %v453
        %494 = vmatprep.subr.mxu0 0.0
        %495 = vmatpush1.xpose.msra.mxu0 %v456
        %496 = vmatprep.subr.mxu0 0.0
        %497 = vmatpush1.xpose.msra.mxu0 %v459
        %498 = vmatprep.subr.mxu0 0.0
        %499 = vmatpush1.xpose.msra.mxu0 %v462
        %500 = vmatprep.subr.mxu0 0.0
        %501 = vmatpush1.xpose.msra.mxu0 %v465
        %502 = vmatprep.subr.mxu0 0.0
        %503 = vmatpush1.xpose.msra.mxu0 %v468
        %504 = vmatprep.subr.mxu0 0.0
        %505 = vmatpush1.xpose.msra.mxu0 %v471
        %506 = vmatprep.subr.mxu0 0.0
        %507 = vmatpush1.xpose.msra.mxu0 %v474
        %508 = vmatprep.subr.mxu0 0.0
        %509 = vmatpush1.xpose.msra.mxu0 0.0
        %510 = vmatprep.subr.mxu0 0.0
        %511 = vmatpush1.xpose.msra.mxu0 0.0
        %512 = vmatprep.subr.mxu0 0.0
        %513 = vmatpush1.xpose.msra.mxu0 0.0
        %514 = vmatprep.subr.mxu0 0.0
        %515 = vmatpush1.xpose.msra.mxu0 0.0
        %516 = vmatprep.subr.mxu0 0.0
        %517 = vmatpush1.xpose.msra.mxu0 0.0
        %518 = vmatprep.subr.mxu0 0.0
        %519 = vmatpush1.xpose.msra.mxu0 0.0
        %520 = vmatprep.subr.mxu0 0.0
        %521 = vmatpush1.xpose.msra.mxu0 0.0
        %522 = vmatprep.subr.mxu0 0.0
        %523 = vmatpush1.xpose.msra.mxu0 0.0
        %524 = vmatprep.subr.mxu0 0.0
        %525 = vmatpush1.xpose.msra.mxu0 0.0
        %526 = vmatprep.subr.mxu0 0.0
        %527 = vmatpush1.xpose.msra.mxu0 0.0
        %528 = vmatprep.subr.mxu0 0.0
        %529 = vmatpush1.xpose.msra.mxu0 0.0
        %530 = vmatprep.subr.mxu0 0.0
        %531 = vmatpush1.xpose.msra.mxu0 0.0
        %532 = vmatprep.subr.mxu0 0.0
        %533 = vmatpush1.xpose.msra.mxu0 0.0
        %534 = vmatprep.subr.mxu0 0.0
        %535 = vmatpush1.xpose.msra.mxu0 0.0
        %536 = vmatprep.subr.mxu0 0.0
        %537 = vmatpush1.xpose.msra.mxu0 0.0
        %538 = vmatprep.subr.mxu0 0.0
        %539 = vmatpush1.xpose.msra.mxu0 0.0
        %540 = vmatprep.mubr.f32.mxu0 0.0
        %541 = vmatmul.mubr.f32.gmra.mrb[0].mxu0 %v426
        %v542 = vpop.f32.mrb[0].mxu0
        %v543 = vadd.f32 0.0, %v542
        %v544 = vpop.f32.mrb[0].mxu0
        %545 = vdwg.mxu0
        %v547 = vsel %vm424, %v293, 0
        %v550 = vsel %vm424, %v312, 0
        %v553 = vsel %vm424, %v313, 0
        %v556 = vsel %vm424, %v314, 0
        %v559 = vsel %vm424, %v315, 0
        %v562 = vsel %vm424, %v316, 0
        %v565 = vsel %vm424, %v317, 0
        %v568 = vsel %vm424, %v318, 0
        %v571 = vsel %vm424, %v319, 0
        %v574 = vsel %vm424, %v320, 0
        %v577 = vsel %vm424, %v321, 0
        %v580 = vsel %vm424, %v322, 0
        %v583 = vsel %vm424, %v323, 0
        %v586 = vsel %vm424, %v324, 0
        %v589 = vsel %vm424, %v325, 0
        %v592 = vsel %vm424, %v326, 0
        %v595 = vsel %vm424, %v327, 0
        %597 = vmatprep.subr.mxu0 0.0
        %598 = vmatpush1.xpose.msra.mxu0 %v550
        %599 = vmatprep.subr.mxu0 0.0
        %600 = vmatpush1.xpose.msra.mxu0 %v553
        %601 = vmatprep.subr.mxu0 0.0
        %602 = vmatpush1.xpose.msra.mxu0 %v556
        %603 = vmatprep.subr.mxu0 0.0
        %604 = vmatpush1.xpose.msra.mxu0 %v559
        %605 = vmatprep.subr.mxu0 0.0
        %606 = vmatpush1.xpose.msra.mxu0 %v562
        %607 = vmatprep.subr.mxu0 0.0
        %608 = vmatpush1.xpose.msra.mxu0 %v565
        %609 = vmatprep.subr.mxu0 0.0
        %610 = vmatpush1.xpose.msra.mxu0 %v568
        %611 = vmatprep.subr.mxu0 0.0
        %612 = vmatpush1.xpose.msra.mxu0 %v571
        %613 = vmatprep.subr.mxu0 0.0
        %614 = vmatpush1.xpose.msra.mxu0 %v574
        %615 = vmatprep.subr.mxu0 0.0
        %616 = vmatpush1.xpose.msra.mxu0 %v577
        %617 = vmatprep.subr.mxu0 0.0
        %618 = vmatpush1.xpose.msra.mxu0 %v580
        %619 = vmatprep.subr.mxu0 0.0
        %620 = vmatpush1.xpose.msra.mxu0 %v583
        %621 = vmatprep.subr.mxu0 0.0
        %622 = vmatpush1.xpose.msra.mxu0 %v586
        %623 = vmatprep.subr.mxu0 0.0
        %624 = vmatpush1.xpose.msra.mxu0 %v589
        %625 = vmatprep.subr.mxu0 0.0
        %626 = vmatpush1.xpose.msra.mxu0 %v592
        %627 = vmatprep.subr.mxu0 0.0
        %628 = vmatpush1.xpose.msra.mxu0 %v595
        %629 = vmatprep.subr.mxu0 0.0
        %630 = vmatpush1.xpose.msra.mxu0 0.0
        %631 = vmatprep.subr.mxu0 0.0
        %632 = vmatpush1.xpose.msra.mxu0 0.0
        %633 = vmatprep.subr.mxu0 0.0
        %634 = vmatpush1.xpose.msra.mxu0 0.0
        %635 = vmatprep.subr.mxu0 0.0
        %636 = vmatpush1.xpose.msra.mxu0 0.0
        %637 = vmatprep.subr.mxu0 0.0
        %638 = vmatpush1.xpose.msra.mxu0 0.0
        %639 = vmatprep.subr.mxu0 0.0
        %640 = vmatpush1.xpose.msra.mxu0 0.0
        %641 = vmatprep.subr.mxu0 0.0
        %642 = vmatpush1.xpose.msra.mxu0 0.0
        %643 = vmatprep.subr.mxu0 0.0
        %644 = vmatpush1.xpose.msra.mxu0 0.0
        %645 = vmatprep.subr.mxu0 0.0
        %646 = vmatpush1.xpose.msra.mxu0 0.0
        %647 = vmatprep.subr.mxu0 0.0
        %648 = vmatpush1.xpose.msra.mxu0 0.0
        %649 = vmatprep.subr.mxu0 0.0
        %650 = vmatpush1.xpose.msra.mxu0 0.0
        %651 = vmatprep.subr.mxu0 0.0
        %652 = vmatpush1.xpose.msra.mxu0 0.0
        %653 = vmatprep.subr.mxu0 0.0
        %654 = vmatpush1.xpose.msra.mxu0 0.0
        %655 = vmatprep.subr.mxu0 0.0
        %656 = vmatpush1.xpose.msra.mxu0 0.0
        %657 = vmatprep.subr.mxu0 0.0
        %658 = vmatpush1.xpose.msra.mxu0 0.0
        %659 = vmatprep.subr.mxu0 0.0
        %660 = vmatpush1.xpose.msra.mxu0 0.0
        %661 = vmatprep.mubr.f32.mxu0 0.0
        %662 = vmatmul.mubr.f32.gmra.mrb[0].mxu0 %v547
        %v663 = vpop.f32.mrb[0].mxu0
        %v664 = vadd.f32 0.0, %v663
        %v665 = vpop.f32.mrb[0].mxu0
        %666 = vdwg.mxu0
        %v668 = vsel %vm424, %v294, 0
        %v671 = vsel %vm424, %v328, 0
        %v674 = vsel %vm424, %v329, 0
        %v677 = vsel %vm424, %v330, 0
        %v680 = vsel %vm424, %v331, 0
        %v683 = vsel %vm424, %v332, 0
        %v686 = vsel %vm424, %v333, 0
        %v689 = vsel %vm424, %v334, 0
        %v692 = vsel %vm424, %v335, 0
        %v695 = vsel %vm424, %v336, 0
        %v698 = vsel %vm424, %v337, 0
        %v701 = vsel %vm424, %v338, 0
        %v704 = vsel %vm424, %v339, 0
        %v707 = vsel %vm424, %v340, 0
        %v710 = vsel %vm424, %v341, 0
        %v713 = vsel %vm424, %v342, 0
        %v716 = vsel %vm424, %v343, 0
        %718 = vmatprep.subr.mxu0 0.0
        %719 = vmatpush1.xpose.msra.mxu0 %v671
        %720 = vmatprep.subr.mxu0 0.0
        %721 = vmatpush1.xpose.msra.mxu0 %v674
        %722 = vmatprep.subr.mxu0 0.0
        %723 = vmatpush1.xpose.msra.mxu0 %v677
        %724 = vmatprep.subr.mxu0 0.0
        %725 = vmatpush1.xpose.msra.mxu0 %v680
        %726 = vmatprep.subr.mxu0 0.0
        %727 = vmatpush1.xpose.msra.mxu0 %v683
        %728 = vmatprep.subr.mxu0 0.0
        %729 = vmatpush1.xpose.msra.mxu0 %v686
        %730 = vmatprep.subr.mxu0 0.0
        %731 = vmatpush1.xpose.msra.mxu0 %v689
        %732 = vmatprep.subr.mxu0 0.0
        %733 = vmatpush1.xpose.msra.mxu0 %v692
        %734 = vmatprep.subr.mxu0 0.0
        %735 = vmatpush1.xpose.msra.mxu0 %v695
        %736 = vmatprep.subr.mxu0 0.0
        %737 = vmatpush1.xpose.msra.mxu0 %v698
        %738 = vmatprep.subr.mxu0 0.0
        %739 = vmatpush1.xpose.msra.mxu0 %v701
        %740 = vmatprep.subr.mxu0 0.0
        %741 = vmatpush1.xpose.msra.mxu0 %v704
        %742 = vmatprep.subr.mxu0 0.0
        %743 = vmatpush1.xpose.msra.mxu0 %v707
        %744 = vmatprep.subr.mxu0 0.0
        %745 = vmatpush1.xpose.msra.mxu0 %v710
        %746 = vmatprep.subr.mxu0 0.0
        %747 = vmatpush1.xpose.msra.mxu0 %v713
        %748 = vmatprep.subr.mxu0 0.0
        %749 = vmatpush1.xpose.msra.mxu0 %v716
        %750 = vmatprep.subr.mxu0 0.0
        %751 = vmatpush1.xpose.msra.mxu0 0.0
        %752 = vmatprep.subr.mxu0 0.0
        %753 = vmatpush1.xpose.msra.mxu0 0.0
        %754 = vmatprep.subr.mxu0 0.0
        %755 = vmatpush1.xpose.msra.mxu0 0.0
        %756 = vmatprep.subr.mxu0 0.0
        %757 = vmatpush1.xpose.msra.mxu0 0.0
        %758 = vmatprep.subr.mxu0 0.0
        %759 = vmatpush1.xpose.msra.mxu0 0.0
        %760 = vmatprep.subr.mxu0 0.0
        %761 = vmatpush1.xpose.msra.mxu0 0.0
        %762 = vmatprep.subr.mxu0 0.0
        %763 = vmatpush1.xpose.msra.mxu0 0.0
        %764 = vmatprep.subr.mxu0 0.0
        %765 = vmatpush1.xpose.msra.mxu0 0.0
        %766 = vmatprep.subr.mxu0 0.0
        %767 = vmatpush1.xpose.msra.mxu0 0.0
        %768 = vmatprep.subr.mxu0 0.0
        %769 = vmatpush1.xpose.msra.mxu0 0.0
        %770 = vmatprep.subr.mxu0 0.0
        %771 = vmatpush1.xpose.msra.mxu0 0.0
        %772 = vmatprep.subr.mxu0 0.0
        %773 = vmatpush1.xpose.msra.mxu0 0.0
        %774 = vmatprep.subr.mxu0 0.0
        %775 = vmatpush1.xpose.msra.mxu0 0.0
        %776 = vmatprep.subr.mxu0 0.0
        %777 = vmatpush1.xpose.msra.mxu0 0.0
        %778 = vmatprep.subr.mxu0 0.0
        %779 = vmatpush1.xpose.msra.mxu0 0.0
        %780 = vmatprep.subr.mxu0 0.0
        %781 = vmatpush1.xpose.msra.mxu0 0.0
        %782 = vmatprep.mubr.f32.mxu0 0.0
        %783 = vmatmul.mubr.f32.gmra.mrb[0].mxu0 %v668
        %v784 = vpop.f32.mrb[0].mxu0
        %v785 = vadd.f32 0.0, %v784
        %v786 = vpop.f32.mrb[0].mxu0
        %787 = vdwg.mxu0
        %v789 = vsel %vm424, %v295, 0
        %v792 = vsel %vm424, %v344, 0
        %v795 = vsel %vm424, %v345, 0
        %v798 = vsel %vm424, %v346, 0
        %v801 = vsel %vm424, %v347, 0
        %v804 = vsel %vm424, %v348, 0
        %v807 = vsel %vm424, %v349, 0
        %v810 = vsel %vm424, %v350, 0
        %v813 = vsel %vm424, %v351, 0
        %v816 = vsel %vm424, %v352, 0
        %v819 = vsel %vm424, %v353, 0
        %v822 = vsel %vm424, %v354, 0
        %v825 = vsel %vm424, %v355, 0
        %v828 = vsel %vm424, %v356, 0
        %v831 = vsel %vm424, %v357, 0
        %v834 = vsel %vm424, %v358, 0
        %v837 = vsel %vm424, %v359, 0
        %839 = vmatprep.subr.mxu0 0.0
        %840 = vmatpush1.xpose.msra.mxu0 %v792
        %841 = vmatprep.subr.mxu0 0.0
        %842 = vmatpush1.xpose.msra.mxu0 %v795
        %843 = vmatprep.subr.mxu0 0.0
        %844 = vmatpush1.xpose.msra.mxu0 %v798
        %845 = vmatprep.subr.mxu0 0.0
        %846 = vmatpush1.xpose.msra.mxu0 %v801
        %847 = vmatprep.subr.mxu0 0.0
        %848 = vmatpush1.xpose.msra.mxu0 %v804
        %849 = vmatprep.subr.mxu0 0.0
        %850 = vmatpush1.xpose.msra.mxu0 %v807
        %851 = vmatprep.subr.mxu0 0.0
        %852 = vmatpush1.xpose.msra.mxu0 %v810
        %853 = vmatprep.subr.mxu0 0.0
        %854 = vmatpush1.xpose.msra.mxu0 %v813
        %855 = vmatprep.subr.mxu0 0.0
        %856 = vmatpush1.xpose.msra.mxu0 %v816
        %857 = vmatprep.subr.mxu0 0.0
        %858 = vmatpush1.xpose.msra.mxu0 %v819
        %859 = vmatprep.subr.mxu0 0.0
        %860 = vmatpush1.xpose.msra.mxu0 %v822
        %861 = vmatprep.subr.mxu0 0.0
        %862 = vmatpush1.xpose.msra.mxu0 %v825
        %863 = vmatprep.subr.mxu0 0.0
        %864 = vmatpush1.xpose.msra.mxu0 %v828
        %865 = vmatprep.subr.mxu0 0.0
        %866 = vmatpush1.xpose.msra.mxu0 %v831
        %867 = vmatprep.subr.mxu0 0.0
        %868 = vmatpush1.xpose.msra.mxu0 %v834
        %869 = vmatprep.subr.mxu0 0.0
        %870 = vmatpush1.xpose.msra.mxu0 %v837
        %871 = vmatprep.subr.mxu0 0.0
        %872 = vmatpush1.xpose.msra.mxu0 0.0
        %873 = vmatprep.subr.mxu0 0.0
        %874 = vmatpush1.xpose.msra.mxu0 0.0
        %875 = vmatprep.subr.mxu0 0.0
        %876 = vmatpush1.xpose.msra.mxu0 0.0
        %877 = vmatprep.subr.mxu0 0.0
        %878 = vmatpush1.xpose.msra.mxu0 0.0
        %879 = vmatprep.subr.mxu0 0.0
        %880 = vmatpush1.xpose.msra.mxu0 0.0
        %881 = vmatprep.subr.mxu0 0.0
        %882 = vmatpush1.xpose.msra.mxu0 0.0
        %883 = vmatprep.subr.mxu0 0.0
        %884 = vmatpush1.xpose.msra.mxu0 0.0
        %885 = vmatprep.subr.mxu0 0.0
        %886 = vmatpush1.xpose.msra.mxu0 0.0
        %887 = vmatprep.subr.mxu0 0.0
        %888 = vmatpush1.xpose.msra.mxu0 0.0
        %889 = vmatprep.subr.mxu0 0.0
        %890 = vmatpush1.xpose.msra.mxu0 0.0
        %891 = vmatprep.subr.mxu0 0.0
        %892 = vmatpush1.xpose.msra.mxu0 0.0
        %893 = vmatprep.subr.mxu0 0.0
        %894 = vmatpush1.xpose.msra.mxu0 0.0
        %895 = vmatprep.subr.mxu0 0.0
        %896 = vmatpush1.xpose.msra.mxu0 0.0
        %897 = vmatprep.subr.mxu0 0.0
        %898 = vmatpush1.xpose.msra.mxu0 0.0
        %899 = vmatprep.subr.mxu0 0.0
        %900 = vmatpush1.xpose.msra.mxu0 0.0
        %901 = vmatprep.subr.mxu0 0.0
        %902 = vmatpush1.xpose.msra.mxu0 0.0
        %903 = vmatprep.mubr.f32.mxu0 0.0
        %904 = vmatmul.mubr.f32.gmra.mrb[0].mxu0 %v789
        %v905 = vpop.f32.mrb[0].mxu0
        %v906 = vadd.f32 0.0, %v905
        %v907 = vpop.f32.mrb[0].mxu0
        %908 = vdwg.mxu0
        %v909 = vlaneseq
        %v910 = vand.u32 %v909, 127
        %vm911 = vcmp.lt.s32.totalorder %v910, 8
        %v912 = vsel %vm911, %v543, -1e+09
        %v913 = vsel %vm911, %v664, -1e+09
        %v914 = vsel %vm911, %v785, -1e+09
        %v915 = vsel %vm911, %v906, -1e+09
        %916 = vmax.xlane.f32.xlu0 %v912
        %v917 = vpop.xlane.xlu0 %916
        %918 = vmax.xlane.f32.xlu0 %v913
        %v919 = vpop.xlane.xlu0 %918
        %920 = vmax.xlane.f32.xlu0 %v914
        %v921 = vpop.xlane.xlu0 %920
        %922 = vmax.xlane.f32.xlu0 %v915
        %v923 = vpop.xlane.xlu0 %922
        %v924 = vsub.f32 %v912, %v917
        %v925 = vsub.f32 %v913, %v919
        %v926 = vsub.f32 %v914, %v921
        %v927 = vsub.f32 %v915, %v923
        %v928 = vmul.f32 %v924, 1.442695
        %v929 = vpow.pop %v928
        %v930 = vmul.f32 %v925, 1.442695
        %v931 = vpow.pop %v930
        %v932 = vmul.f32 %v926, 1.442695
        %v933 = vpow.pop %v932
        %v934 = vmul.f32 %v927, 1.442695
        %v935 = vpow.pop %v934
        %936 = vadd.xlane.f32.xlu0 %v929
        %v937 = vpop.xlane.xlu0 %936
        %938 = vadd.xlane.f32.xlu0 %v931
        %v939 = vpop.xlane.xlu0 %938
        %940 = vadd.xlane.f32.xlu0 %v933
        %v941 = vpop.xlane.xlu0 %940
        %942 = vadd.xlane.f32.xlu0 %v935
        %v943 = vpop.xlane.xlu0 %942
        %v944 = vrcp.pop %v937
        %v945 = vrcp.pop %v939
        %v946 = vrcp.pop %v941
        %v947 = vrcp.pop %v943
        %v948 = vmul.f32 %v929, %v944
        %v949 = vmul.f32 %v931, %v945
        %v950 = vmul.f32 %v933, %v946
        %v951 = vmul.f32 %v935, %v947
        %952 = vmatprep.subr.mxu0 0.0
        %953 = vmatpush1.msra.mxu0 %v360
        %954 = vmatprep.subr.mxu0 0.0
        %955 = vmatpush1.msra.mxu0 %v361
        %956 = vmatprep.subr.mxu0 0.0
        %957 = vmatpush1.msra.mxu0 %v362
        %958 = vmatprep.subr.mxu0 0.0
        %959 = vmatpush1.msra.mxu0 %v363
        %960 = vmatprep.subr.mxu0 0.0
        %961 = vmatpush1.msra.mxu0 %v364
        %962 = vmatprep.subr.mxu0 0.0
        %963 = vmatpush1.msra.mxu0 %v365
        %964 = vmatprep.subr.mxu0 0.0
        %965 = vmatpush1.msra.mxu0 %v366
        %966 = vmatprep.subr.mxu0 0.0
        %967 = vmatpush1.msra.mxu0 %v367
        %968 = vmatprep.subr.mxu0 0.0
        %969 = vmatpush1.msra.mxu0 %v368
        %970 = vmatprep.subr.mxu0 0.0
        %971 = vmatpush1.msra.mxu0 %v369
        %972 = vmatprep.subr.mxu0 0.0
        %973 = vmatpush1.msra.mxu0 %v370
        %974 = vmatprep.subr.mxu0 0.0
        %975 = vmatpush1.msra.mxu0 %v371
        %976 = vmatprep.subr.mxu0 0.0
        %977 = vmatpush1.msra.mxu0 %v372
        %978 = vmatprep.subr.mxu0 0.0
        %979 = vmatpush1.msra.mxu0 %v373
        %980 = vmatprep.subr.mxu0 0.0
        %981 = vmatpush1.msra.mxu0 %v374
        %982 = vmatprep.subr.mxu0 0.0
        %983 = vmatpush1.msra.mxu0 %v375
        %984 = vmatprep.subr.mxu0 0.0
        %985 = vmatpush1.msra.mxu0 0.0
        %986 = vmatprep.subr.mxu0 0.0
        %987 = vmatpush1.msra.mxu0 0.0
        %988 = vmatprep.subr.mxu0 0.0
        %989 = vmatpush1.msra.mxu0 0.0
        %990 = vmatprep.subr.mxu0 0.0
        %991 = vmatpush1.msra.mxu0 0.0
        %992 = vmatprep.subr.mxu0 0.0
        %993 = vmatpush1.msra.mxu0 0.0
        %994 = vmatprep.subr.mxu0 0.0
        %995 = vmatpush1.msra.mxu0 0.0
        %996 = vmatprep.subr.mxu0 0.0
        %997 = vmatpush1.msra.mxu0 0.0
        %998 = vmatprep.subr.mxu0 0.0
        %999 = vmatpush1.msra.mxu0 0.0
        %1000 = vmatprep.subr.mxu0 0.0
        %1001 = vmatpush1.msra.mxu0 0.0
        %1002 = vmatprep.subr.mxu0 0.0
        %1003 = vmatpush1.msra.mxu0 0.0
        %1004 = vmatprep.subr.mxu0 0.0
        %1005 = vmatpush1.msra.mxu0 0.0
        %1006 = vmatprep.subr.mxu0 0.0
        %1007 = vmatpush1.msra.mxu0 0.0
        %1008 = vmatprep.subr.mxu0 0.0
        %1009 = vmatpush1.msra.mxu0 0.0
        %1010 = vmatprep.subr.mxu0 0.0
        %1011 = vmatpush1.msra.mxu0 0.0
        %1012 = vmatprep.subr.mxu0 0.0
        %1013 = vmatpush1.msra.mxu0 0.0
        %1014 = vmatprep.subr.mxu0 0.0
        %1015 = vmatpush1.msra.mxu0 0.0
        %1016 = vmatprep.mubr.f32.mxu0 0.0
        %1017 = vmatmul.mubr.f32.gmra.mrb[0].mxu0 %v948
        %v1018 = vpop.f32.mrb[0].mxu0
        %v1019 = vadd.f32 0.0, %v1018
        %v1020 = vpop.f32.mrb[0].mxu0
        %1021 = vdwg.mxu0
        %1022 = vmatprep.subr.mxu0 0.0
        %1023 = vmatpush1.msra.mxu0 %v376
        %1024 = vmatprep.subr.mxu0 0.0
        %1025 = vmatpush1.msra.mxu0 %v377
        %1026 = vmatprep.subr.mxu0 0.0
        %1027 = vmatpush1.msra.mxu0 %v378
        %1028 = vmatprep.subr.mxu0 0.0
        %1029 = vmatpush1.msra.mxu0 %v379
        %1030 = vmatprep.subr.mxu0 0.0
        %1031 = vmatpush1.msra.mxu0 %v380
        %1032 = vmatprep.subr.mxu0 0.0
        %1033 = vmatpush1.msra.mxu0 %v381
        %1034 = vmatprep.subr.mxu0 0.0
        %1035 = vmatpush1.msra.mxu0 %v382
        %1036 = vmatprep.subr.mxu0 0.0
        %1037 = vmatpush1.msra.mxu0 %v383
        %1038 = vmatprep.subr.mxu0 0.0
        %1039 = vmatpush1.msra.mxu0 %v384
        %1040 = vmatprep.subr.mxu0 0.0
        %1041 = vmatpush1.msra.mxu0 %v385
        %1042 = vmatprep.subr.mxu0 0.0
        %1043 = vmatpush1.msra.mxu0 %v386
        %1044 = vmatprep.subr.mxu0 0.0
        %1045 = vmatpush1.msra.mxu0 %v387
        %1046 = vmatprep.subr.mxu0 0.0
        %1047 = vmatpush1.msra.mxu0 %v388
        %1048 = vmatprep.subr.mxu0 0.0
        %1049 = vmatpush1.msra.mxu0 %v389
        %1050 = vmatprep.subr.mxu0 0.0
        %1051 = vmatpush1.msra.mxu0 %v390
        %1052 = vmatprep.subr.mxu0 0.0
        %1053 = vmatpush1.msra.mxu0 %v391
        %1054 = vmatprep.subr.mxu0 0.0
        %1055 = vmatpush1.msra.mxu0 0.0
        %1056 = vmatprep.subr.mxu0 0.0
        %1057 = vmatpush1.msra.mxu0 0.0
        %1058 = vmatprep.subr.mxu0 0.0
        %1059 = vmatpush1.msra.mxu0 0.0
        %1060 = vmatprep.subr.mxu0 0.0
        %1061 = vmatpush1.msra.mxu0 0.0
        %1062 = vmatprep.subr.mxu0 0.0
        %1063 = vmatpush1.msra.mxu0 0.0
        %1064 = vmatprep.subr.mxu0 0.0
        %1065 = vmatpush1.msra.mxu0 0.0
        %1066 = vmatprep.subr.mxu0 0.0
        %1067 = vmatpush1.msra.mxu0 0.0
        %1068 = vmatprep.subr.mxu0 0.0
        %1069 = vmatpush1.msra.mxu0 0.0
        %1070 = vmatprep.subr.mxu0 0.0
        %1071 = vmatpush1.msra.mxu0 0.0
        %1072 = vmatprep.subr.mxu0 0.0
        %1073 = vmatpush1.msra.mxu0 0.0
        %1074 = vmatprep.subr.mxu0 0.0
        %1075 = vmatpush1.msra.mxu0 0.0
        %1076 = vmatprep.subr.mxu0 0.0
        %1077 = vmatpush1.msra.mxu0 0.0
        %1078 = vmatprep.subr.mxu0 0.0
        %1079 = vmatpush1.msra.mxu0 0.0
        %1080 = vmatprep.subr.mxu0 0.0
        %1081 = vmatpush1.msra.mxu0 0.0
        %1082 = vmatprep.subr.mxu0 0.0
        %1083 = vmatpush1.msra.mxu0 0.0
        %1084 = vmatprep.subr.mxu0 0.0
        %1085 = vmatpush1.msra.mxu0 0.0
        %1086 = vmatprep.mubr.f32.mxu0 0.0
        %1087 = vmatmul.mubr.f32.gmra.mrb[0].mxu0 %v949
        %v1088 = vpop.f32.mrb[0].mxu0
        %v1089 = vadd.f32 0.0, %v1088
        %v1090 = vpop.f32.mrb[0].mxu0
        %1091 = vdwg.mxu0
        %1092 = vmatprep.subr.mxu0 0.0
        %1093 = vmatpush1.msra.mxu0 %v392
        %1094 = vmatprep.subr.mxu0 0.0
        %1095 = vmatpush1.msra.mxu0 %v393
        %1096 = vmatprep.subr.mxu0 0.0
        %1097 = vmatpush1.msra.mxu0 %v394
        %1098 = vmatprep.subr.mxu0 0.0
        %1099 = vmatpush1.msra.mxu0 %v395
        %1100 = vmatprep.subr.mxu0 0.0
        %1101 = vmatpush1.msra.mxu0 %v396
        %1102 = vmatprep.subr.mxu0 0.0
        %1103 = vmatpush1.msra.mxu0 %v397
        %1104 = vmatprep.subr.mxu0 0.0
        %1105 = vmatpush1.msra.mxu0 %v398
        %1106 = vmatprep.subr.mxu0 0.0
        %1107 = vmatpush1.msra.mxu0 %v399
        %1108 = vmatprep.subr.mxu0 0.0
        %1109 = vmatpush1.msra.mxu0 %v400
        %1110 = vmatprep.subr.mxu0 0.0
        %1111 = vmatpush1.msra.mxu0 %v401
        %1112 = vmatprep.subr.mxu0 0.0
        %1113 = vmatpush1.msra.mxu0 %v402
        %1114 = vmatprep.subr.mxu0 0.0
        %1115 = vmatpush1.msra.mxu0 %v403
        %1116 = vmatprep.subr.mxu0 0.0
        %1117 = vmatpush1.msra.mxu0 %v404
        %1118 = vmatprep.subr.mxu0 0.0
        %1119 = vmatpush1.msra.mxu0 %v405
        %1120 = vmatprep.subr.mxu0 0.0
        %1121 = vmatpush1.msra.mxu0 %v406
        %1122 = vmatprep.subr.mxu0 0.0
        %1123 = vmatpush1.msra.mxu0 %v407
        %1124 = vmatprep.subr.mxu0 0.0
        %1125 = vmatpush1.msra.mxu0 0.0
        %1126 = vmatprep.subr.mxu0 0.0
        %1127 = vmatpush1.msra.mxu0 0.0
        %1128 = vmatprep.subr.mxu0 0.0
        %1129 = vmatpush1.msra.mxu0 0.0
        %1130 = vmatprep.subr.mxu0 0.0
        %1131 = vmatpush1.msra.mxu0 0.0
        %1132 = vmatprep.subr.mxu0 0.0
        %1133 = vmatpush1.msra.mxu0 0.0
        %1134 = vmatprep.subr.mxu0 0.0
        %1135 = vmatpush1.msra.mxu0 0.0
        %1136 = vmatprep.subr.mxu0 0.0
        %1137 = vmatpush1.msra.mxu0 0.0
        %1138 = vmatprep.subr.mxu0 0.0
        %1139 = vmatpush1.msra.mxu0 0.0
        %1140 = vmatprep.subr.mxu0 0.0
        %1141 = vmatpush1.msra.mxu0 0.0
        %1142 = vmatprep.subr.mxu0 0.0
        %1143 = vmatpush1.msra.mxu0 0.0
        %1144 = vmatprep.subr.mxu0 0.0
        %1145 = vmatpush1.msra.mxu0 0.0
        %1146 = vmatprep.subr.mxu0 0.0
        %1147 = vmatpush1.msra.mxu0 0.0
        %1148 = vmatprep.subr.mxu0 0.0
        %1149 = vmatpush1.msra.mxu0 0.0
        %1150 = vmatprep.subr.mxu0 0.0
        %1151 = vmatpush1.msra.mxu0 0.0
        %1152 = vmatprep.subr.mxu0 0.0
        %1153 = vmatpush1.msra.mxu0 0.0
        %1154 = vmatprep.subr.mxu0 0.0
        %1155 = vmatpush1.msra.mxu0 0.0
        %1156 = vmatprep.mubr.f32.mxu0 0.0
        %1157 = vmatmul.mubr.f32.gmra.mrb[0].mxu0 %v950
        %v1158 = vpop.f32.mrb[0].mxu0
        %v1159 = vadd.f32 0.0, %v1158
        %v1160 = vpop.f32.mrb[0].mxu0
        %1161 = vdwg.mxu0
        %1162 = vmatprep.subr.mxu0 0.0
        %1163 = vmatpush1.msra.mxu0 %v408
        %1164 = vmatprep.subr.mxu0 0.0
        %1165 = vmatpush1.msra.mxu0 %v409
        %1166 = vmatprep.subr.mxu0 0.0
        %1167 = vmatpush1.msra.mxu0 %v410
        %1168 = vmatprep.subr.mxu0 0.0
        %1169 = vmatpush1.msra.mxu0 %v411
        %1170 = vmatprep.subr.mxu0 0.0
        %1171 = vmatpush1.msra.mxu0 %v412
        %1172 = vmatprep.subr.mxu0 0.0
        %1173 = vmatpush1.msra.mxu0 %v413
        %1174 = vmatprep.subr.mxu0 0.0
        %1175 = vmatpush1.msra.mxu0 %v414
        %1176 = vmatprep.subr.mxu0 0.0
        %1177 = vmatpush1.msra.mxu0 %v415
        %1178 = vmatprep.subr.mxu0 0.0
        %1179 = vmatpush1.msra.mxu0 %v416
        %1180 = vmatprep.subr.mxu0 0.0
        %1181 = vmatpush1.msra.mxu0 %v417
        %1182 = vmatprep.subr.mxu0 0.0
        %1183 = vmatpush1.msra.mxu0 %v418
        %1184 = vmatprep.subr.mxu0 0.0
        %1185 = vmatpush1.msra.mxu0 %v419
        %1186 = vmatprep.subr.mxu0 0.0
        %1187 = vmatpush1.msra.mxu0 %v420
        %1188 = vmatprep.subr.mxu0 0.0
        %1189 = vmatpush1.msra.mxu0 %v421
        %1190 = vmatprep.subr.mxu0 0.0
        %1191 = vmatpush1.msra.mxu0 %v422
        %1192 = vmatprep.subr.mxu0 0.0
        %1193 = vmatpush1.msra.mxu0 %v423
        %1194 = vmatprep.subr.mxu0 0.0
        %1195 = vmatpush1.msra.mxu0 0.0
        %1196 = vmatprep.subr.mxu0 0.0
        %1197 = vmatpush1.msra.mxu0 0.0
        %1198 = vmatprep.subr.mxu0 0.0
        %1199 = vmatpush1.msra.mxu0 0.0
        %1200 = vmatprep.subr.mxu0 0.0
        %1201 = vmatpush1.msra.mxu0 0.0
        %1202 = vmatprep.subr.mxu0 0.0
        %1203 = vmatpush1.msra.mxu0 0.0
        %1204 = vmatprep.subr.mxu0 0.0
        %1205 = vmatpush1.msra.mxu0 0.0
        %1206 = vmatprep.subr.mxu0 0.0
        %1207 = vmatpush1.msra.mxu0 0.0
        %1208 = vmatprep.subr.mxu0 0.0
        %1209 = vmatpush1.msra.mxu0 0.0
        %1210 = vmatprep.subr.mxu0 0.0
        %1211 = vmatpush1.msra.mxu0 0.0
        %1212 = vmatprep.subr.mxu0 0.0
        %1213 = vmatpush1.msra.mxu0 0.0
        %1214 = vmatprep.subr.mxu0 0.0
        %1215 = vmatpush1.msra.mxu0 0.0
        %1216 = vmatprep.subr.mxu0 0.0
        %1217 = vmatpush1.msra.mxu0 0.0
        %1218 = vmatprep.subr.mxu0 0.0
        %1219 = vmatpush1.msra.mxu0 0.0
        %1220 = vmatprep.subr.mxu0 0.0
        %1221 = vmatpush1.msra.mxu0 0.0
        %1222 = vmatprep.subr.mxu0 0.0
        %1223 = vmatpush1.msra.mxu0 0.0
        %1224 = vmatprep.subr.mxu0 0.0
        %1225 = vmatpush1.msra.mxu0 0.0
        %1226 = vmatprep.mubr.f32.mxu0 0.0
        %1227 = vmatmul.mubr.f32.gmra.mrb[0].mxu0 %v951
        %v1228 = vpop.f32.mrb[0].mxu0
        %v1229 = vadd.f32 0.0, %v1228
        %v1230 = vpop.f32.mrb[0].mxu0
        %1231 = vdwg.mxu0
        %1232 = vst [vmem:[%s255] sm:$0xff] %v1019
        %1233 = vst [vmem:[%s255 + $0x8] sm:$0xff] %v1089
        %1234 = vst [vmem:[%s255 + $0x10] sm:$0xff] %v1159
        %1235 = vst [vmem:[%s255 + $0x18] sm:$0xff] %v1229
        %1236 = vst [vmem:[%s262] sm:$0xff] %v948
        %1237 = vst [vmem:[%s262 + $0x8] sm:$0xff] %v949
        %1238 = vst [vmem:[%s262 + $0x10] sm:$0xff] %v950
        %1239 = vst [vmem:[%s262 + $0x18] sm:$0xff] %v951
        %s1240 = sand.u32 %s124, 1
        %s1241 = scalar_lea.sflag [#allocation3], %s1240
        %s1242 = sand.u32 %s124, 1
        %s1243 = smul.addr %s1242, 32
        %s1244 = scalar_lea.vmem [#allocation2], %s1243
        %s1245 = sand.u32 %s152, 1
        %s1246 = scalar_lea.sflag [#allocation5], %s1245
        %s1247 = sand.u32 %s152, 1
        %s1248 = smul.addr %s1247, 32
        %s1249 = scalar_lea.vmem [#allocation4], %s1248
        // Predicated region
        $region33: #{tpu_custom_call.1} parent=31 // pred_check
          %p1250 = pneg %p134
        $region34: #{tpu_custom_call.1} parent=31 // pred_check_branch
          %1252 = sbr.rel (%p1250) target = $region36
        $region35: #{tpu_custom_call.1} parent=31 // pred_region
          %s1253 = smul.u32 4, %s26
          %s1255 = ssub.s32 512, 512
          %1256 = vsyncadd %s1241, %s1255
          %s1257 = sadd.s32 %s27, %s1253
          %s1258 = smul.addr %s1257, 128
          %s1259 = scalar_lea.hbm %s3, %s1258
          %s1260 = sshll.u32 %s1244, 4
          %s1261 = int_to_ptr.vmem [resolvable:$true] %s1260
          %1266 = dma.vmem_to_hbm [thread:$0]  %s1261, 512, %s1259, %s1241, 128, 128, 8
        $region36: #{tpu_custom_call.1} parent=31 // pred_fallthru
          _
        // Predicated region
        $region37: #{tpu_custom_call.1} parent=31 // pred_check
          %p1267 = pneg %p162
        $region38: #{tpu_custom_call.1} parent=31 // pred_check_branch
          %1269 = sbr.rel (%p1267) target = $region40
        $region39: #{tpu_custom_call.1} parent=31 // pred_region
          %s1270 = smul.u32 4, %s26
          %s1272 = ssub.s32 512, 512
          %1273 = vsyncadd %s1246, %s1272
          %s1274 = sadd.s32 %s27, %s1270
          %s1275 = smul.addr %s1274, 128
          %s1276 = scalar_lea.hbm %s4, %s1275
          %s1277 = sshll.u32 %s1249, 4
          %s1278 = int_to_ptr.vmem [resolvable:$true] %s1277
          %1283 = dma.vmem_to_hbm [thread:$0]  %s1278, 512, %s1276, %s1246, 128, 128, 8
        $region40: #{tpu_custom_call.1} parent=31 // pred_fallthru
          _
      $region32: #{tpu_custom_call.1} parent=5 // pred_fallthru
        _
      %p1284 = scmp.le.s32.totalorder 2, %s17
      // Predicated region
      $region41: #{tpu_custom_call.1} parent=5 // pred_check
        %p1285 = pneg %p1284
      $region42: #{tpu_custom_call.1} parent=5 // pred_check_branch
        %1287 = sbr.rel (%p1285) target = $region44
      $region43: #{tpu_custom_call.1} parent=5 // pred_region
        %s1288 = ssub.s32 %s17, 2
        // Predicated region
        $region45: #{tpu_custom_call.1} parent=43 // pred_check
          %p1289 = pneg %p140
        $region46: #{tpu_custom_call.1} parent=43 // pred_check_branch
          %1291 = sbr.rel (%p1289) target = $region48
        $region47: #{tpu_custom_call.1} parent=43 // pred_region
          %s1292 = sand.u32 %s125, 1
          %s1293 = scalar_lea.sflag [#allocation3], %s1292
          %s1294 = sand.u32 %s125, 1
          %s1295 = smul.addr %s1294, 32
          %s1296 = scalar_lea.vmem [#allocation2], %s1295
          %1297 = dma.done %s1293, 512
        $region48: #{tpu_custom_call.1} parent=43 // pred_fallthru
          _
        // Predicated region
        $region49: #{tpu_custom_call.1} parent=43 // pred_check
          %p1298 = pneg %p168
        $region50: #{tpu_custom_call.1} parent=43 // pred_check_branch
          %1300 = sbr.rel (%p1298) target = $region52
        $region51: #{tpu_custom_call.1} parent=43 // pred_region
          %s1301 = sand.u32 %s153, 1
          %s1302 = scalar_lea.sflag [#allocation5], %s1301
          %s1303 = sand.u32 %s153, 1
          %s1304 = smul.addr %s1303, 32
          %s1305 = scalar_lea.vmem [#allocation4], %s1304
          %1306 = dma.done %s1302, 512
        $region52: #{tpu_custom_call.1} parent=43 // pred_fallthru
          _
      $region44: #{tpu_custom_call.1} parent=5 // pred_fallthru
        _
    $region6: #{tpu_custom_call.1} parent=1 // loop_footer
      %s21 = sadd.s32 1, %s17
    $region7: #{tpu_custom_call.1} parent=1 // loop_footer_branch
      %16 = sbr.rel target = $region3
    $region8: #{tpu_custom_call.1} parent=1 // loop_exit
      _
    %1307 = vsyncpa [#allocation3], 1
    %s1308 = scalar_lea.sflag [#allocation3], 1
    %1309 = vsyncpa %s1308, 1
    %1310 = vsyncpa [#allocation5], 1
    %s1311 = scalar_lea.sflag [#allocation5], 1
    %1312 = vsyncpa %s1311, 1

</llo_original>
